<compile_context>
chip_gen: v7x
topology: tpu7x:2x2x1
jax: 0.10.0
libtpu: 0.0.40
codegen_flags: <defaults>
</compile_context>

<pallas_src>
import jax
import jax.numpy as jnp
from jax.experimental import pallas as pl
from jax.experimental.pallas import tpu as pltpu

_HP = 128  # hidden width padded to a full vreg lane width


def _round_up(n, m):
    return ((n + m - 1) // m) * m


def _reward_mlp_kernel(x_ref, w1_ref, b1_ref, w2_ref, b2_ref, w3_ref, b3_ref, o_ref):
    # x_ref: (TB, D_in) bf16; w1/w2: bf16; b1/b2/w3_row: f32 (1, HP); b3: (1,) f32 in SMEM
    x = x_ref[...]
    h1 = jnp.dot(x, w1_ref[...], preferred_element_type=jnp.float32) + b1_ref[...]
    h1 = jnp.maximum(h1, 0.0)                                           # (TB, HP) f32
    h2 = jnp.dot(h1.astype(jnp.bfloat16), w2_ref[...],
                 preferred_element_type=jnp.float32) + b2_ref[...]
    h2 = jnp.maximum(h2, 0.0)                                           # (TB, HP) f32
    # Final (HP -> 1) projection on VPU + lane reduction (an N=1 MXU matmul would
    # waste a full pass), stored lane-dense: batch lives on the lane axis.
    r = jnp.sum(h2 * w3_ref[...], axis=-1) + b3_ref[0]                  # (TB,)
    o_ref[0, 0, :] = r.astype(o_ref.dtype)                              # (1, 1, TB)


def reward_model_forward(x, params, *, block_b=None):
    """x: (B, D_in) float32 -> (B, 1) float32, matching nn.Sequential forward."""
    w1, b1, w2, b2, w3, b3 = params
    B, D_in = x.shape
    H1 = w1.shape[1]          # 64
    H2 = w2.shape[1]          # 64

    if block_b is None:
        # Big tiles amortize the ~0.35us/step pipeline overhead; keep >= 2 grid
        # steps when the batch allows so v7x can shard across both TensorCores.
        block_b = max(16, min(512, _round_up(pl.cdiv(B, 2), 16)))
    block_b = _round_up(min(block_b, _round_up(B, 16)), 16)

    B_pad = _round_up(B, block_b)
    num_blocks = B_pad // block_b

    # --- parameter prep: pad hidden width to 128 lanes, bf16 MXU operands -----
    w1p = jnp.zeros((D_in, _HP), jnp.bfloat16).at[:, :H1].set(w1.astype(jnp.bfloat16))
    b1p = jnp.zeros((1, _HP), jnp.float32).at[:, :H1].set(b1.reshape(1, H1).astype(jnp.float32))
    w2p = jnp.zeros((_HP, _HP), jnp.bfloat16).at[:H1, :H2].set(w2.astype(jnp.bfloat16))
    b2p = jnp.zeros((1, _HP), jnp.float32).at[:, :H2].set(b2.reshape(1, H2).astype(jnp.float32))
    w3p = jnp.zeros((1, _HP), jnp.float32).at[:, :H2].set(w3.reshape(1, H2).astype(jnp.float32))
    b3p = b3.reshape(1).astype(jnp.float32)

    # Zero-pad the batch (so padded rows are well defined) and stream x as bf16.
    xp = jnp.zeros((B_pad, D_in), jnp.bfloat16).at[:B].set(x.astype(jnp.bfloat16))

    out = pl.pallas_call(
        _reward_mlp_kernel,
        out_shape=jax.ShapeDtypeStruct((num_blocks, 1, block_b), jnp.float32),
        grid_spec=pltpu.PrefetchScalarGridSpec(
            num_scalar_prefetch=0,
            grid=(num_blocks,),
            in_specs=[
                pl.BlockSpec((block_b, D_in), lambda i: (i, 0)),   # x tile over batch
                pl.BlockSpec((D_in, _HP), lambda i: (0, 0)),       # W1 (full, bf16)
                pl.BlockSpec((1, _HP), lambda i: (0, 0)),          # b1
                pl.BlockSpec((_HP, _HP), lambda i: (0, 0)),        # W2 (full, bf16)
                pl.BlockSpec((1, _HP), lambda i: (0, 0)),          # b2
                pl.BlockSpec((1, _HP), lambda i: (0, 0)),          # W3 as a row (f32)
                pl.BlockSpec(memory_space=pltpu.MemorySpace.SMEM), # b3 scalar in SMEM
            ],
            # lane-dense output: one (1, 1, block_b) slab per grid step
            out_specs=pl.BlockSpec((1, 1, block_b), lambda i: (i, 0, 0)),
        ),
        compiler_params=pltpu.CompilerParams(
            dimension_semantics=("parallel",),
        ),
    )(xp, w1p, b1p, w2p, b2p, w3p, b3p)

    return out.reshape(-1)[:B].reshape(B, 1)


def init_params(key, input_dim, hidden_dim=64):
    """Deterministic init mimicking nn.Linear default (uniform +-1/sqrt(fan_in)).

    Weights stored as (in_features, out_features) == transpose of PyTorch layout.
    """
    keys = jax.random.split(key, 6)

    def lin(kw, kb, fan_in, fan_out):
        bound = 1.0 / jnp.sqrt(fan_in)
        w = jax.random.uniform(kw, (fan_in, fan_out), jnp.float32, -bound, bound)
        b = jax.random.uniform(kb, (1, fan_out), jnp.float32, -bound, bound)
        return w, b

    w1, b1 = lin(keys[0], keys[1], input_dim, hidden_dim)
    w2, b2 = lin(keys[2], keys[3], hidden_dim, 64)
    w3, b3 = lin(keys[4], keys[5], 64, 1)
    return (w1, b1, w2, b2, w3, b3)


if __name__ == "__main__":
    key = jax.random.PRNGKey(0)
    k_param, k_x = jax.random.split(key)

    input_dim = 10        # RewardModel(input_size=10)
    hidden_dim = 64
    batch = 30            # small, deliberately not a multiple of the tile

    params = init_params(k_param, input_dim, hidden_dim)
    x = jax.random.normal(k_x, (batch, input_dim), jnp.float32)

    out = reward_model_forward(x, params)
    out = jax.block_until_ready(out)
    assert out.shape == (batch, 1)

    w1, b1, w2, b2, w3, b3 = params

    # Reference in the same mixed precision as the kernel (bf16 MXU, f32 accum).
    xb = x.astype(jnp.bfloat16)
    h1 = jnp.maximum(jnp.dot(xb, w1.astype(jnp.bfloat16),
                             preferred_element_type=jnp.float32) + b1, 0.0)
    h2 = jnp.maximum(jnp.dot(h1.astype(jnp.bfloat16), w2.astype(jnp.bfloat16),
                             preferred_element_type=jnp.float32) + b2, 0.0)
    ref_mixed = h2 @ w3 + b3
    assert jnp.allclose(out, ref_mixed, atol=1e-3, rtol=1e-3)

    # Loose check against the full-f32 reference (semantics of the PyTorch module).
    r1 = jnp.maximum(x @ w1 + b1, 0.0)
    r2 = jnp.maximum(r1 @ w2 + b2, 0.0)
    ref_f32 = r2 @ w3 + b3
    assert jnp.allclose(out, ref_f32, atol=5e-2, rtol=5e-2)

    print("KERNEL_OK")
</pallas_src>

<mosaic_0001>
module attributes {stable_mosaic.version = 11 : i64} {
  func.func @_reward_mlp_kernel(%arg0: i32, %arg1: memref<16x10xbf16, #tpu.memory_space<vmem>>, %arg2: memref<10x128xbf16, #tpu.memory_space<vmem>>, %arg3: memref<1x128xf32, #tpu.memory_space<vmem>>, %arg4: memref<128x128xbf16, #tpu.memory_space<vmem>>, %arg5: memref<1x128xf32, #tpu.memory_space<vmem>>, %arg6: memref<1x128xf32, #tpu.memory_space<vmem>>, %arg7: memref<1xf32, #tpu.memory_space<smem>>, %arg8: memref<1x1x16xf32, #tpu.memory_space<vmem>>) attributes {dimension_semantics = [#tpu.dimension_semantics<parallel>], iteration_bounds = array<i64: 2>, scalar_prefetch = 0 : i64, scratch_operands = 0 : i64, tpu.core_type = #tpu.core_type<tc>, window_params = [{transform_indices = @transform_0, window_bounds = array<i64: 16, 10>}, {pipeline_mode = #tpu.pipeline_mode<synchronous>, transform_indices = @transform_1, window_bounds = array<i64: 10, 128>}, {pipeline_mode = #tpu.pipeline_mode<synchronous>, transform_indices = @transform_2, window_bounds = array<i64: 1, 128>}, {pipeline_mode = #tpu.pipeline_mode<synchronous>, transform_indices = @transform_3, window_bounds = array<i64: 128, 128>}, {pipeline_mode = #tpu.pipeline_mode<synchronous>, transform_indices = @transform_4, window_bounds = array<i64: 1, 128>}, {pipeline_mode = #tpu.pipeline_mode<synchronous>, transform_indices = @transform_5, window_bounds = array<i64: 1, 128>}, {transform_indices = @transform_6, window_bounds = array<i64: 1>}, {transform_indices = @transform_7, window_bounds = array<i64: 1, 1, 16>}]} {
    %c0 = arith.constant 0 : index
    %c0_0 = arith.constant 0 : index
    %0 = vector.load %arg1[%c0, %c0_0] : memref<16x10xbf16, #tpu.memory_space<vmem>>, vector<16x10xbf16>
    %c0_1 = arith.constant 0 : index
    %c0_2 = arith.constant 0 : index
    %1 = vector.load %arg2[%c0_1, %c0_2] : memref<10x128xbf16, #tpu.memory_space<vmem>>, vector<10x128xbf16>
    %cst = arith.constant dense<0.000000e+00> : vector<16x128xf32>
    %2 = tpu.matmul %0, %1, %cst {dimension_numbers = #tpu.dot_dimension_numbers<[1], [0], [0], [1], [0, 0, 1, 1], [], []>} : vector<16x10xbf16>, vector<10x128xbf16>, vector<16x128xf32> -> vector<16x128xf32>
    %c0_3 = arith.constant 0 : index
    %c0_4 = arith.constant 0 : index
    %3 = vector.load %arg3[%c0_3, %c0_4] : memref<1x128xf32, #tpu.memory_space<vmem>>, vector<1x128xf32>
    %4 = vector.broadcast %3 : vector<1x128xf32> to vector<16x128xf32>
    %5 = arith.addf %2, %4 : vector<16x128xf32>
    %cst_5 = arith.constant 0.000000e+00 : f32
    %6 = vector.broadcast %cst_5 : f32 to vector<16x128xf32>
    %7 = arith.maximumf %5, %6 : vector<16x128xf32>
    %8 = arith.truncf %7 : vector<16x128xf32> to vector<16x128xbf16>
    %c0_6 = arith.constant 0 : index
    %c0_7 = arith.constant 0 : index
    %9 = vector.load %arg4[%c0_6, %c0_7] : memref<128x128xbf16, #tpu.memory_space<vmem>>, vector<128x128xbf16>
    %cst_8 = arith.constant dense<0.000000e+00> : vector<16x128xf32>
    %10 = tpu.matmul %8, %9, %cst_8 {dimension_numbers = #tpu.dot_dimension_numbers<[1], [0], [0], [1], [0, 0, 1, 1], [], []>} : vector<16x128xbf16>, vector<128x128xbf16>, vector<16x128xf32> -> vector<16x128xf32>
    %c0_9 = arith.constant 0 : index
    %c0_10 = arith.constant 0 : index
    %11 = vector.load %arg5[%c0_9, %c0_10] : memref<1x128xf32, #tpu.memory_space<vmem>>, vector<1x128xf32>
    %12 = vector.broadcast %11 : vector<1x128xf32> to vector<16x128xf32>
    %13 = arith.addf %10, %12 : vector<16x128xf32>
    %cst_11 = arith.constant 0.000000e+00 : f32
    %14 = vector.broadcast %cst_11 : f32 to vector<16x128xf32>
    %15 = arith.maximumf %13, %14 : vector<16x128xf32>
    %c0_12 = arith.constant 0 : index
    %c0_13 = arith.constant 0 : index
    %16 = vector.load %arg6[%c0_12, %c0_13] : memref<1x128xf32, #tpu.memory_space<vmem>>, vector<1x128xf32>
    %17 = vector.broadcast %16 : vector<1x128xf32> to vector<16x128xf32>
    %18 = arith.mulf %15, %17 : vector<16x128xf32>
    %cst_14 = arith.constant dense<0.000000e+00> : vector<16xf32>
    %19 = vector.multi_reduction <add>, %18, %cst_14 [1] : vector<16x128xf32> to vector<16xf32>
    %c0_15 = arith.constant 0 : index
    %20 = memref.load %arg7[%c0_15] : memref<1xf32, #tpu.memory_space<smem>>
    %21 = vector.broadcast %20 : f32 to vector<16xf32>
    %22 = arith.addf %19, %21 : vector<16xf32>
    %c0_16 = arith.constant 0 : index
    %c0_17 = arith.constant 0 : index
    %c0_18 = arith.constant 0 : index
    %23 = vector.load %arg8[%c0_16, %c0_17, %c0_18] : memref<1x1x16xf32, #tpu.memory_space<vmem>>, vector<1x1x16xf32>
    %24 = vector.shape_cast %23 : vector<1x1x16xf32> to vector<16xf32>
    %25 = vector.shape_cast %22 : vector<16xf32> to vector<1x1x16xf32>
    tpu.vector_store %arg8[%c0_16, %c0_17, %c0_18], %25 {strides = array<i32>} : memref<1x1x16xf32, #tpu.memory_space<vmem>>, vector<1x1x16xf32>,
    return
  }
  func.func @transform_0(%arg0: i32) -> (i32, i32) {
    %c0_i32 = arith.constant 0 : i32
    %c0_i32_0 = arith.constant 0 : i32
    return %arg0, %c0_i32 : i32, i32
  }
  func.func @transform_1(%arg0: i32) -> (i32, i32) {
    %c0_i32 = arith.constant 0 : i32
    %c0_i32_0 = arith.constant 0 : i32
    %c0_i32_1 = arith.constant 0 : i32
    return %c0_i32, %c0_i32_0 : i32, i32
  }
  func.func @transform_2(%arg0: i32) -> (i32, i32) {
    %c0_i32 = arith.constant 0 : i32
    %c0_i32_0 = arith.constant 0 : i32
    %c0_i32_1 = arith.constant 0 : i32
    return %c0_i32, %c0_i32_0 : i32, i32
  }
  func.func @transform_3(%arg0: i32) -> (i32, i32) {
    %c0_i32 = arith.constant 0 : i32
    %c0_i32_0 = arith.constant 0 : i32
    %c0_i32_1 = arith.constant 0 : i32
    return %c0_i32, %c0_i32_0 : i32, i32
  }
  func.func @transform_4(%arg0: i32) -> (i32, i32) {
    %c0_i32 = arith.constant 0 : i32
    %c0_i32_0 = arith.constant 0 : i32
    %c0_i32_1 = arith.constant 0 : i32
    return %c0_i32, %c0_i32_0 : i32, i32
  }
  func.func @transform_5(%arg0: i32) -> (i32, i32) {
    %c0_i32 = arith.constant 0 : i32
    %c0_i32_0 = arith.constant 0 : i32
    %c0_i32_1 = arith.constant 0 : i32
    return %c0_i32, %c0_i32_0 : i32, i32
  }
  func.func @transform_6(%arg0: i32) -> i32 {
    %c0_i32 = arith.constant 0 : i32
    %c0_i32_0 = arith.constant 0 : i32
    return %c0_i32 : i32
  }
  func.func @transform_7(%arg0: i32) -> (i32, i32, i32) {
    %c0_i32 = arith.constant 0 : i32
    %c0_i32_0 = arith.constant 0 : i32
    %c0_i32_1 = arith.constant 0 : i32
    return %arg0, %c0_i32, %c0_i32_0 : i32, i32, i32
  }
}

</mosaic_0001>

<llo_original>
// kernel: tpu_custom_call.1
$region0: #{tpu_custom_call.1}
  #allocation0 [shape = 'u32[]', space=smem, size = 0x4, offset = 0x4, fixed_abs, tag = 'smem constant byte address 0x4 - core index']
  #allocation1 [shape = 'u32[144,128]{1,0:T(1,128)}', space=vmem, size = 0x12000, scoped, tag = 'internal scratch']
  #allocation2 [shape = 'f32[1]{0:T(128)S(6)}', space=smem, size = 0x200, scoped, tag = 'scoped memory for tpu_custom_call.1']
  %s0 = inlined_call_operand.vmem [shape: bf16[32,10], index: 0, kind: input, shape index: {}]
  %s1 = inlined_call_operand.vmem [shape: bf16[10,128], index: 1, kind: input, shape index: {}]
  %s2 = inlined_call_operand.vmem [shape: f32[1,128], index: 2, kind: input, shape index: {}]
  %s3 = inlined_call_operand.hbm [shape: bf16[128,128], index: 3, kind: input, shape index: {}]
  %s4 = inlined_call_operand.vmem [shape: f32[1,128], index: 4, kind: input, shape index: {}]
  %s5 = inlined_call_operand.vmem [shape: f32[1,128], index: 5, kind: input, shape index: {}]
  %s6 = inlined_call_operand.<no memory space> [shape: f32[1], index: 6, kind: input, shape index: {}]
  %s7 = inlined_call_operand.hbm [shape: f32[2,1,16], index: 7, kind: output, shape index: {}]
  %s8 = sld [smem:[#allocation0]]
  $region65: #{tpu_custom_call.1} parent=0
    _
  %s10 = ssub.s32 1, %s8
  %s11 = scalar_select 0, %s10, %s8
  %12 = sst [smem:[#allocation2]] %s6
  $region1: #{tpu_custom_call.1} parent=0
    #allocation3 [shape = 'u8[32768]{0}', space=vmem, size = 0x8000, scoped, tag = 'input window, operand 3, single buffered']
    #allocation4 [shape = 's32[2]{0}', space=sflag, size = 0x8, scoped, tag = 'scoped memory for tpu_custom_call.1']
    #allocation5 [shape = 's32[2]{0}', space=sflag, size = 0x8, scoped, tag = 'scoped memory for tpu_custom_call.1']
    #allocation6 [shape = 'u8[1024]{0}', space=vmem, size = 0x400, scoped, tag = 'output window, operand 0']
    %13 = vsyncpa [#allocation4], 0
    %14 = vsyncpa [#allocation5], 0
    %s15 = scalar_lea.sflag [#allocation5], 1
    %16 = vsyncpa %s15, 0
    loop: start=0, step=1, limit=4
    $region2: #{tpu_custom_call.1} parent=1 // loop_pre_header
      _
    $region3: #{tpu_custom_call.1} parent=1 // loop_header
      %s18 = sphi 0, %s22
      %p19 = scmp.ge.s32.totalorder %s18, 4
      %s28 = sphi 0, %s30
      %s31 = sphi 0, %s28
      %s32 = sphi 0, %s31
      %s48 = sphi 0, %s32
      %s52 = sphi 0, %s52
      %s54 = sphi 0, %s52
      %s55 = sphi 0, %s54
      %s69 = sphi 0, %s55
      %s73 = sphi 0, %s73
      %s75 = sphi 0, %s73
      %s76 = sphi 0, %s75
      %s90 = sphi 0, %s76
      %s94 = sphi 0, %s94
      %s96 = sphi 0, %s94
      %s97 = sphi 0, %s96
      %s111 = sphi 0, %s97
      %s115 = sphi 0, %s115
      %s117 = sphi 0, %s115
      %s118 = sphi 0, %s117
      %s132 = sphi 0, %s118
      %s136 = sphi 0, %s136
      %s138 = sphi 0, %s136
      %s139 = sphi 0, %s138
      %s153 = sphi 0, %s139
      %s157 = sphi 0, %s157
      %s159 = sphi 0, %s157
      %s160 = sphi 0, %s159
      %s174 = sphi 0, %s160
      %s180 = sphi 0, %s182
      %s183 = sphi 0, %s180
      %s184 = sphi 0, %s183
      %s200 = sphi 0, %s184
    $region4: #{tpu_custom_call.1} parent=1 // loop_header_branch
      %21 = sbr.rel (%p19) target = $region8
    $region5: #{tpu_custom_call.1} parent=1 // loop_body
      %s23 = ssub.s32 %s18, 1
      %s24 = ssub.s32 %s18, 2
      %s25 = sadd.s32 %s18, 1
      %s26 = ssub.s32 %s18, %s25
      %p27 = scmp.eq.s32.totalorder %s26, 0
      %s29 = sadd.s32 %s28, 1
      %s30 = scalar_select %p27, %s28, %s29
      %p33 = pneg %p27
      %p34 = scmp.eq.s32.totalorder %s18, 1
      %p35 = por %p33, %p34
      %p36 = scmp.ne.s32.totalorder %s28, %s31
      %p37 = scmp.eq.s32.totalorder %s18, 0
      %p38 = por %p36, %p37
      %p39 = scmp.ne.s32.totalorder %s28, %s31
      %p40 = scmp.eq.s32.totalorder %s23, 1
      %p41 = por %p39, %p40
      %p42 = scmp.ne.s32.totalorder %s31, %s32
      %p43 = scmp.eq.s32.totalorder %s23, 0
      %p44 = por %p42, %p43
      %p45 = scmp.ne.s32.totalorder %s31, %s32
      %p46 = scmp.eq.s32.totalorder %s24, 1
      %p47 = por %p45, %p46
      %p49 = scmp.ne.s32.totalorder %s32, %s48
      %p50 = scmp.eq.s32.totalorder %s24, 0
      %p51 = por %p49, %p50
      %s53 = sadd.s32 %s52, 1
      %p56 = scmp.eq.s32.totalorder %s18, 1
      %p57 = scmp.ne.s32.totalorder %s52, %s54
      %p58 = scmp.eq.s32.totalorder %s18, 0
      %p59 = por %p57, %p58
      %p60 = scmp.ne.s32.totalorder %s52, %s54
      %p61 = scmp.eq.s32.totalorder %s23, 1
      %p62 = por %p60, %p61
      %p63 = scmp.ne.s32.totalorder %s54, %s55
      %p64 = scmp.eq.s32.totalorder %s23, 0
      %p65 = por %p63, %p64
      %p66 = scmp.ne.s32.totalorder %s54, %s55
      %p67 = scmp.eq.s32.totalorder %s24, 1
      %p68 = por %p66, %p67
      %p70 = scmp.ne.s32.totalorder %s55, %s69
      %p71 = scmp.eq.s32.totalorder %s24, 0
      %p72 = por %p70, %p71
      %s74 = sadd.s32 %s73, 1
      %p77 = scmp.eq.s32.totalorder %s18, 1
      %p78 = scmp.ne.s32.totalorder %s73, %s75
      %p79 = scmp.eq.s32.totalorder %s18, 0
      %p80 = por %p78, %p79
      %p81 = scmp.ne.s32.totalorder %s73, %s75
      %p82 = scmp.eq.s32.totalorder %s23, 1
      %p83 = por %p81, %p82
      %p84 = scmp.ne.s32.totalorder %s75, %s76
      %p85 = scmp.eq.s32.totalorder %s23, 0
      %p86 = por %p84, %p85
      %p87 = scmp.ne.s32.totalorder %s75, %s76
      %p88 = scmp.eq.s32.totalorder %s24, 1
      %p89 = por %p87, %p88
      %p91 = scmp.ne.s32.totalorder %s76, %s90
      %p92 = scmp.eq.s32.totalorder %s24, 0
      %p93 = por %p91, %p92
      %s95 = sadd.s32 %s94, 1
      %p98 = scmp.eq.s32.totalorder %s18, 1
      %p99 = scmp.ne.s32.totalorder %s94, %s96
      %p100 = scmp.eq.s32.totalorder %s18, 0
      %p101 = por %p99, %p100
      %p102 = scmp.ne.s32.totalorder %s94, %s96
      %p103 = scmp.eq.s32.totalorder %s23, 1
      %p104 = por %p102, %p103
      %p105 = scmp.ne.s32.totalorder %s96, %s97
      %p106 = scmp.eq.s32.totalorder %s23, 0
      %p107 = por %p105, %p106
      %p108 = scmp.ne.s32.totalorder %s96, %s97
      %p109 = scmp.eq.s32.totalorder %s24, 1
      %p110 = por %p108, %p109
      %p112 = scmp.ne.s32.totalorder %s97, %s111
      %p113 = scmp.eq.s32.totalorder %s24, 0
      %p114 = por %p112, %p113
      %s116 = sadd.s32 %s115, 1
      %p119 = scmp.eq.s32.totalorder %s18, 1
      %p120 = scmp.ne.s32.totalorder %s115, %s117
      %p121 = scmp.eq.s32.totalorder %s18, 0
      %p122 = por %p120, %p121
      %p123 = scmp.ne.s32.totalorder %s115, %s117
      %p124 = scmp.eq.s32.totalorder %s23, 1
      %p125 = por %p123, %p124
      %p126 = scmp.ne.s32.totalorder %s117, %s118
      %p127 = scmp.eq.s32.totalorder %s23, 0
      %p128 = por %p126, %p127
      %p129 = scmp.ne.s32.totalorder %s117, %s118
      %p130 = scmp.eq.s32.totalorder %s24, 1
      %p131 = por %p129, %p130
      %p133 = scmp.ne.s32.totalorder %s118, %s132
      %p134 = scmp.eq.s32.totalorder %s24, 0
      %p135 = por %p133, %p134
      %s137 = sadd.s32 %s136, 1
      %p140 = scmp.eq.s32.totalorder %s18, 1
      %p141 = scmp.ne.s32.totalorder %s136, %s138
      %p142 = scmp.eq.s32.totalorder %s18, 0
      %p143 = por %p141, %p142
      %p144 = scmp.ne.s32.totalorder %s136, %s138
      %p145 = scmp.eq.s32.totalorder %s23, 1
      %p146 = por %p144, %p145
      %p147 = scmp.ne.s32.totalorder %s138, %s139
      %p148 = scmp.eq.s32.totalorder %s23, 0
      %p149 = por %p147, %p148
      %p150 = scmp.ne.s32.totalorder %s138, %s139
      %p151 = scmp.eq.s32.totalorder %s24, 1
      %p152 = por %p150, %p151
      %p154 = scmp.ne.s32.totalorder %s139, %s153
      %p155 = scmp.eq.s32.totalorder %s24, 0
      %p156 = por %p154, %p155
      %s158 = sadd.s32 %s157, 1
      %p161 = scmp.eq.s32.totalorder %s18, 1
      %p162 = scmp.ne.s32.totalorder %s157, %s159
      %p163 = scmp.eq.s32.totalorder %s18, 0
      %p164 = por %p162, %p163
      %p165 = scmp.ne.s32.totalorder %s157, %s159
      %p166 = scmp.eq.s32.totalorder %s23, 1
      %p167 = por %p165, %p166
      %p168 = scmp.ne.s32.totalorder %s159, %s160
      %p169 = scmp.eq.s32.totalorder %s23, 0
      %p170 = por %p168, %p169
      %p171 = scmp.ne.s32.totalorder %s159, %s160
      %p172 = scmp.eq.s32.totalorder %s24, 1
      %p173 = por %p171, %p172
      %p175 = scmp.ne.s32.totalorder %s160, %s174
      %p176 = scmp.eq.s32.totalorder %s24, 0
      %p177 = por %p175, %p176
      %s178 = ssub.s32 %s18, %s25
      %p179 = scmp.eq.s32.totalorder %s178, 0
      %s181 = sadd.s32 %s180, 1
      %s182 = scalar_select %p179, %s180, %s181
      %p185 = pneg %p179
      %p186 = scmp.eq.s32.totalorder %s18, 1
      %p187 = por %p185, %p186
      %p188 = scmp.ne.s32.totalorder %s180, %s183
      %p189 = scmp.eq.s32.totalorder %s18, 0
      %p190 = por %p188, %p189
      %p191 = scmp.ne.s32.totalorder %s180, %s183
      %p192 = scmp.eq.s32.totalorder %s23, 1
      %p193 = por %p191, %p192
      %p194 = scmp.ne.s32.totalorder %s183, %s184
      %p195 = scmp.eq.s32.totalorder %s23, 0
      %p196 = por %p194, %p195
      %p197 = scmp.ne.s32.totalorder %s183, %s184
      %p198 = scmp.eq.s32.totalorder %s24, 1
      %p199 = por %p197, %p198
      %p201 = scmp.ne.s32.totalorder %s184, %s200
      %p202 = scmp.eq.s32.totalorder %s24, 0
      %p203 = por %p201, %p202
      %p204 = scmp.le.s32.totalorder 1, %s18
      %p205 = scmp.lt.s32.totalorder %s18, 3
      %p206 = pnand %p204, %p205
      %p207 = pneg %p206
      // Predicated region
      $region9: #{tpu_custom_call.1} parent=5 // pred_check
        _
      $region10: #{tpu_custom_call.1} parent=5 // pred_check_branch
        %209 = sbr.rel (%p206) target = $region12
      $region11: #{tpu_custom_call.1} parent=5 // pred_region
        %s210 = ssub.s32 %s18, 1
        // Predicated region
        $region13: #{tpu_custom_call.1} parent=11 // pred_check
          %p211 = pneg %p65
        $region14: #{tpu_custom_call.1} parent=11 // pred_check_branch
          %213 = sbr.rel (%p211) target = $region16
        $region15: #{tpu_custom_call.1} parent=11 // pred_region
          _
        $region16: #{tpu_custom_call.1} parent=11 // pred_fallthru
          _
        // Predicated region
        $region17: #{tpu_custom_call.1} parent=11 // pred_check
          %p214 = pneg %p86
        $region18: #{tpu_custom_call.1} parent=11 // pred_check_branch
          %216 = sbr.rel (%p214) target = $region20
        $region19: #{tpu_custom_call.1} parent=11 // pred_region
          _
        $region20: #{tpu_custom_call.1} parent=11 // pred_fallthru
          _
        // Predicated region
        $region21: #{tpu_custom_call.1} parent=11 // pred_check
          %p217 = pneg %p107
        $region22: #{tpu_custom_call.1} parent=11 // pred_check_branch
          %219 = sbr.rel (%p217) target = $region24
        $region23: #{tpu_custom_call.1} parent=11 // pred_region
          %s221 = ssub.s32 1024, 1024
          %222 = vsyncadd [#allocation4], %s221
          %s223 = sshll.u32 [#allocation3], 4
          %s224 = int_to_ptr.vmem [resolvable:$true] %s223
          %229 = dma.hbm_to_vmem [thread:$0]  %s3, 1024, %s224, [#allocation4], 64, 64, 4
        $region24: #{tpu_custom_call.1} parent=11 // pred_fallthru
          _
        // Predicated region
        $region25: #{tpu_custom_call.1} parent=11 // pred_check
          %p230 = pneg %p128
        $region26: #{tpu_custom_call.1} parent=11 // pred_check_branch
          %232 = sbr.rel (%p230) target = $region28
        $region27: #{tpu_custom_call.1} parent=11 // pred_region
          _
        $region28: #{tpu_custom_call.1} parent=11 // pred_fallthru
          _
        // Predicated region
        $region29: #{tpu_custom_call.1} parent=11 // pred_check
          %p233 = pneg %p149
        $region30: #{tpu_custom_call.1} parent=11 // pred_check_branch
          %235 = sbr.rel (%p233) target = $region32
        $region31: #{tpu_custom_call.1} parent=11 // pred_region
          _
        $region32: #{tpu_custom_call.1} parent=11 // pred_fallthru
          _
        // Predicated region
        $region33: #{tpu_custom_call.1} parent=11 // pred_check
          %p236 = pneg %p170
        $region34: #{tpu_custom_call.1} parent=11 // pred_check_branch
          %238 = sbr.rel (%p236) target = $region36
        $region35: #{tpu_custom_call.1} parent=11 // pred_region
          _
        $region36: #{tpu_custom_call.1} parent=11 // pred_fallthru
          _
      $region12: #{tpu_custom_call.1} parent=5 // pred_fallthru
        _
      %p239 = scmp.lt.s32.totalorder %s18, 2
      // Predicated region
      $region37: #{tpu_custom_call.1} parent=5 // pred_check
        %p240 = pneg %p239
      $region38: #{tpu_custom_call.1} parent=5 // pred_check_branch
        %242 = sbr.rel (%p240) target = $region40
      $region39: #{tpu_custom_call.1} parent=5 // pred_region
        // Predicated region
        $region41: #{tpu_custom_call.1} parent=39 // pred_check
          %p243 = pneg %p38
        $region42: #{tpu_custom_call.1} parent=39 // pred_check_branch
          %245 = sbr.rel (%p243) target = $region44
        $region43: #{tpu_custom_call.1} parent=39 // pred_region
          %s246 = smul.u32 2, %s18
          %p247 = scmp.lt.s32.totalorder %s246, 3
          %s248 = scalar_select %p247, %s246, 3
          %s249 = smul.addr %s248, 4
          %s250 = scalar_lea.vmem %s0, %s249
          %s251 = smul.u32 2, %s18
        $region44: #{tpu_custom_call.1} parent=39 // pred_fallthru
          _
      $region40: #{tpu_custom_call.1} parent=5 // pred_fallthru
        _
      %p252 = scmp.le.s32.totalorder 1, %s18
      %p253 = scmp.lt.s32.totalorder %s18, 3
      %p254 = pnand %p252, %p253
      %p255 = pneg %p254
      // Predicated region
      $region45: #{tpu_custom_call.1} parent=5 // pred_check
        _
      $region46: #{tpu_custom_call.1} parent=5 // pred_check_branch
        %257 = sbr.rel (%p254) target = $region48
      $region47: #{tpu_custom_call.1} parent=5 // pred_region
        %s258 = ssub.s32 %s18, 1
        // Predicated region
        $region49: #{tpu_custom_call.1} parent=47 // pred_check
          %p259 = pneg %p107
        $region50: #{tpu_custom_call.1} parent=47 // pred_check_branch
          %261 = sbr.rel (%p259) target = $region52
        $region51: #{tpu_custom_call.1} parent=47 // pred_region
          %262 = dma.done [#allocation4], 1024
        $region52: #{tpu_custom_call.1} parent=47 // pred_fallthru
          _
        %s263 = smul.u32 2, %s23
        %p264 = scmp.lt.s32.totalorder %s263, 3
        %s265 = scalar_select %p264, %s263, 3
        %s266 = smul.addr %s265, 4
        %s267 = scalar_lea.vmem %s0, %s266
        %p268 = pneg %p44
        %p269 = pneg %p41
        %p270 = pneg %p65
        %p271 = pneg %p62
        %p272 = pneg %p86
        %p273 = pneg %p83
        %p274 = pneg %p107
        %p275 = pneg %p104
        %p276 = pneg %p128
        %p277 = pneg %p125
        %p278 = pneg %p149
        %p279 = pneg %p146
        %p280 = pneg %p170
        %p281 = pneg %p167
        %p282 = pneg %p196
        %p283 = pneg %p193
        %s284 = sand.u32 %s183, 1
        %s285 = scalar_lea.sflag [#allocation5], %s284
        %s286 = sand.u32 %s183, 1
        %s287 = scalar_lea.vmem [#allocation6], %s286
        %s288 = smul.u32 2, %s23
        %p289 = scmp.lt.s32.totalorder %s288, 3
        %s290 = scalar_select %p289, %s288, 3
        %s291 = smul.addr %s290, 4
        %s292 = scalar_lea.vmem %s0, %s291
        %s293 = smul.u32 2, %s23
        %v295 = vld [vmem:[%s292] sm:$0xf]
        %v296 = vld [vmem:[%s292 + $0x4] sm:$0xf]
        %v297 = vld [vmem:[%s1] sm:$0xf]
        %v298 = vld [vmem:[%s1 + $0x4] sm:$0x1]
        %v299 = vld [vmem:[%s2] sm:$0x1]
        %v301 = vlaneseq
        %v302 = vshrl.u32 %v301, 7
        %v303 = vsub.s32 0, %v302
        %v304 = vrot.slane %v299, %v303
        %v308 = vunpack.c.l.b16 %v295
        %v309 = vunpack.c.l.b16 %v296
        %v310 = vpack.c.b16 %v309, %v308
        %v313 = vunpack.c.l.b16 %v297
        %v314 = vunpack.c.l.b16 %v298
        %v315 = vpack.c.b16 %v314, %v313
        %vm316 = vcmask 80896
        %v318 = vsel %vm316, %v310, 0
        %vm320 = vcmask 1044480
        %v322 = vsel %vm320, %v315, 0
        %324 = vmatprep.subr.bf16.mxu0 0
        %325 = vmatpush1.bf16.msra.mxu0 %v322
        %326 = vmatprep.subr.bf16.mxu0 0
        %327 = vmatpush1.bf16.msra.mxu0 0
        %328 = vmatprep.subr.bf16.mxu0 0
        %329 = vmatpush1.bf16.msra.mxu0 0
        %330 = vmatprep.subr.bf16.mxu0 0
        %331 = vmatpush1.bf16.msra.mxu0 0
        %332 = vmatprep.subr.bf16.mxu0 0
        %333 = vmatpush1.bf16.msra.mxu0 0
        %334 = vmatprep.subr.bf16.mxu0 0
        %335 = vmatpush1.bf16.msra.mxu0 0
        %336 = vmatprep.subr.bf16.mxu0 0
        %337 = vmatpush1.bf16.msra.mxu0 0
        %338 = vmatprep.subr.bf16.mxu0 0
        %339 = vmatpush1.bf16.msra.mxu0 0
        %340 = vmatprep.subr.bf16.mxu0 0
        %341 = vmatpush1.bf16.msra.mxu0 0
        %342 = vmatprep.subr.bf16.mxu0 0
        %343 = vmatpush1.bf16.msra.mxu0 0
        %344 = vmatprep.subr.bf16.mxu0 0
        %345 = vmatpush1.bf16.msra.mxu0 0
        %346 = vmatprep.subr.bf16.mxu0 0
        %347 = vmatpush1.bf16.msra.mxu0 0
        %348 = vmatprep.subr.bf16.mxu0 0
        %349 = vmatpush1.bf16.msra.mxu0 0
        %350 = vmatprep.subr.bf16.mxu0 0
        %351 = vmatpush1.bf16.msra.mxu0 0
        %352 = vmatprep.subr.bf16.mxu0 0
        %353 = vmatpush1.bf16.msra.mxu0 0
        %354 = vmatprep.subr.bf16.mxu0 0
        %355 = vmatpush1.bf16.msra.mxu0 0
        %356 = vmatprep.mubr.bf16.mxu0 0
        %357 = vmatmul.mubr.bf16.gmra.mrb[0].mxu0 %v318
        %v358 = vpop.f32.mrb[0].mxu0
        %v359 = vadd.f32 %v304, %v358
        %v360 = vpop.f32.mrb[0].mxu0
        %v361 = vpop.f32.mrb[0].mxu0
        %v362 = vadd.f32 %v304, %v361
        %v363 = vpop.f32.mrb[0].mxu0
        %364 = vdwg.mxu0
        %v365 = vmax.f32 %v359, 0.0
        %v366 = vmax.f32 %v362, 0.0
        %v367 = vpack.c.bf16 %v366, %v365
        %v368 = vld [vmem:[#allocation3] sm:$0xf]
        %v369 = vld [vmem:[#allocation3 + $0x4] sm:$0xf]
        %v370 = vld [vmem:[#allocation3 + $0x8] sm:$0xf]
        %v371 = vld [vmem:[#allocation3 + $0xc] sm:$0xf]
        %v372 = vld [vmem:[#allocation3 + $0x10] sm:$0xf]
        %v373 = vld [vmem:[#allocation3 + $0x14] sm:$0xf]
        %v374 = vld [vmem:[#allocation3 + $0x18] sm:$0xf]
        %v375 = vld [vmem:[#allocation3 + $0x1c] sm:$0xf]
        %v376 = vld [vmem:[#allocation3 + $0x20] sm:$0xf]
        %v377 = vld [vmem:[#allocation3 + $0x24] sm:$0xf]
        %v378 = vld [vmem:[#allocation3 + $0x28] sm:$0xf]
        %v379 = vld [vmem:[#allocation3 + $0x2c] sm:$0xf]
        %v380 = vld [vmem:[#allocation3 + $0x30] sm:$0xf]
        %v381 = vld [vmem:[#allocation3 + $0x34] sm:$0xf]
        %v382 = vld [vmem:[#allocation3 + $0x38] sm:$0xf]
        %v383 = vld [vmem:[#allocation3 + $0x3c] sm:$0xf]
        %v384 = vld [vmem:[%s4] sm:$0x1]
        %v386 = vlaneseq
        %v387 = vshrl.u32 %v386, 7
        %v388 = vsub.s32 0, %v387
        %v389 = vrot.slane %v384, %v388
        %v407 = vunpack.c.l.b16 %v368
        %v408 = vunpack.c.l.b16 %v369
        %v409 = vunpack.c.l.b16 %v370
        %v410 = vunpack.c.l.b16 %v371
        %v411 = vunpack.c.l.b16 %v372
        %v412 = vunpack.c.l.b16 %v373
        %v413 = vunpack.c.l.b16 %v374
        %v414 = vunpack.c.l.b16 %v375
        %v415 = vunpack.c.l.b16 %v376
        %v416 = vunpack.c.l.b16 %v377
        %v417 = vunpack.c.l.b16 %v378
        %v418 = vunpack.c.l.b16 %v379
        %v419 = vunpack.c.l.b16 %v380
        %v420 = vunpack.c.l.b16 %v381
        %v421 = vunpack.c.l.b16 %v382
        %v422 = vunpack.c.l.b16 %v383
        %v423 = vpack.c.b16 %v408, %v407
        %v424 = vpack.c.b16 %v410, %v409
        %v425 = vpack.c.b16 %v412, %v411
        %v426 = vpack.c.b16 %v414, %v413
        %v427 = vpack.c.b16 %v416, %v415
        %v428 = vpack.c.b16 %v418, %v417
        %v429 = vpack.c.b16 %v420, %v419
        %v430 = vpack.c.b16 %v422, %v421
        %439 = vmatprep.subr.bf16.mxu0 0
        %440 = vmatpush1.bf16.msra.mxu0 %v423
        %441 = vmatprep.subr.bf16.mxu0 0
        %442 = vmatpush1.bf16.msra.mxu0 %v424
        %443 = vmatprep.subr.bf16.mxu0 0
        %444 = vmatpush1.bf16.msra.mxu0 %v425
        %445 = vmatprep.subr.bf16.mxu0 0
        %446 = vmatpush1.bf16.msra.mxu0 %v426
        %447 = vmatprep.subr.bf16.mxu0 0
        %448 = vmatpush1.bf16.msra.mxu0 %v427
        %449 = vmatprep.subr.bf16.mxu0 0
        %450 = vmatpush1.bf16.msra.mxu0 %v428
        %451 = vmatprep.subr.bf16.mxu0 0
        %452 = vmatpush1.bf16.msra.mxu0 %v429
        %453 = vmatprep.subr.bf16.mxu0 0
        %454 = vmatpush1.bf16.msra.mxu0 %v430
        %455 = vmatprep.subr.bf16.mxu0 0
        %456 = vmatpush1.bf16.msra.mxu0 0
        %457 = vmatprep.subr.bf16.mxu0 0
        %458 = vmatpush1.bf16.msra.mxu0 0
        %459 = vmatprep.subr.bf16.mxu0 0
        %460 = vmatpush1.bf16.msra.mxu0 0
        %461 = vmatprep.subr.bf16.mxu0 0
        %462 = vmatpush1.bf16.msra.mxu0 0
        %463 = vmatprep.subr.bf16.mxu0 0
        %464 = vmatpush1.bf16.msra.mxu0 0
        %465 = vmatprep.subr.bf16.mxu0 0
        %466 = vmatpush1.bf16.msra.mxu0 0
        %467 = vmatprep.subr.bf16.mxu0 0
        %468 = vmatpush1.bf16.msra.mxu0 0
        %469 = vmatprep.subr.bf16.mxu0 0
        %470 = vmatpush1.bf16.msra.mxu0 0
        %471 = vmatprep.mubr.bf16.mxu0 0
        %472 = vmatmul.mubr.bf16.gmra.mrb[0].mxu0 %v367
        %v473 = vpop.f32.mrb[0].mxu0
        %v474 = vadd.f32 %v389, %v473
        %v475 = vpop.f32.mrb[0].mxu0
        %v476 = vpop.f32.mrb[0].mxu0
        %v477 = vadd.f32 %v389, %v476
        %v478 = vpop.f32.mrb[0].mxu0
        %479 = vdwg.mxu0
        %v480 = vmax.f32 %v474, 0.0
        %v481 = vmax.f32 %v477, 0.0
        %v482 = vld [vmem:[%s5] sm:$0x1]
        %v484 = vlaneseq
        %v485 = vshrl.u32 %v484, 7
        %v486 = vsub.s32 0, %v485
        %v487 = vrot.slane %v482, %v486
        %v489 = vmul.f32 %v480, %v487
        %v490 = vmul.f32 %v481, %v487
        %491 = vadd.xlane.f32.xlu0 %v489
        %v492 = vpop.xlane.xlu0 %491
        %493 = vadd.xlane.f32.xlu0 %v490
        %v494 = vpop.xlane.xlu0 %493
        %s495 = sld [smem:[#allocation2]]
        %v496 = vstv %s495
        %v497 = vadd.f32 %v492, %v496
        %v498 = vadd.f32 %v494, %v496
        %v501 = vlaneseq
        %v502 = vand.u32 %v501, 127
        %v503 = vlaneseq
        %v504 = vshrl.u32 %v503, 7
        %v505 = vsub.s32 %v502, %v504
        %v506 = vrot.slane %v497, %v505
        %v507 = vadd.s32 %v502, 4294967288
        %v508 = vlaneseq
        %v509 = vshrl.u32 %v508, 7
        %v510 = vsub.s32 %v507, %v509
        %v511 = vrot.slane %v498, %v510
        %vm512 = vcmask 130112
        %v513 = vsel %vm512, %v511, %v506
        %vm515 = vcmask 122880
        %516 = vst.msk [vmem:[%s287] sm:$0x1] %vm515, %v513
        %s517 = sand.u32 %s183, 1
        %s518 = scalar_lea.sflag [#allocation5], %s517
        %s519 = sand.u32 %s183, 1
        %s520 = scalar_lea.vmem [#allocation6], %s519
        // Predicated region
        $region53: #{tpu_custom_call.1} parent=47 // pred_check
          %p521 = pneg %p193
        $region54: #{tpu_custom_call.1} parent=47 // pred_check_branch
          %523 = sbr.rel (%p521) target = $region56
        $region55: #{tpu_custom_call.1} parent=47 // pred_region
          %s525 = ssub.s32 16, 16
          %526 = vsyncadd %s518, %s525
          %s527 = smul.addr %s23, 16
          %s528 = scalar_lea.hbm %s7, %s527
          %s530 = sshll.u32 %s520, 4
          %s531 = int_to_ptr.vmem [resolvable:$true] %s530
          %533 = dma.vmem_to_hbm [thread:$0]  %s531, 16, %s528, %s518
        $region56: #{tpu_custom_call.1} parent=47 // pred_fallthru
          _
      $region48: #{tpu_custom_call.1} parent=5 // pred_fallthru
        _
      %p534 = scmp.le.s32.totalorder 2, %s18
      // Predicated region
      $region57: #{tpu_custom_call.1} parent=5 // pred_check
        %p535 = pneg %p534
      $region58: #{tpu_custom_call.1} parent=5 // pred_check_branch
        %537 = sbr.rel (%p535) target = $region60
      $region59: #{tpu_custom_call.1} parent=5 // pred_region
        %s538 = ssub.s32 %s18, 2
        // Predicated region
        $region61: #{tpu_custom_call.1} parent=59 // pred_check
          %p539 = pneg %p199
        $region62: #{tpu_custom_call.1} parent=59 // pred_check_branch
          %541 = sbr.rel (%p539) target = $region64
        $region63: #{tpu_custom_call.1} parent=59 // pred_region
          %s542 = sand.u32 %s184, 1
          %s543 = scalar_lea.sflag [#allocation5], %s542
          %s544 = sand.u32 %s184, 1
          %s545 = scalar_lea.vmem [#allocation6], %s544
          %546 = dma.done %s543, 16
        $region64: #{tpu_custom_call.1} parent=59 // pred_fallthru
          _
      $region60: #{tpu_custom_call.1} parent=5 // pred_fallthru
        _
    $region6: #{tpu_custom_call.1} parent=1 // loop_footer
      %s22 = sadd.s32 1, %s18
    $region7: #{tpu_custom_call.1} parent=1 // loop_footer_branch
      %17 = sbr.rel target = $region3
    $region8: #{tpu_custom_call.1} parent=1 // loop_exit
      _
    %547 = vsyncpa [#allocation4], 1
    %s548 = scalar_lea.sflag [#allocation4], 1
    %549 = vsyncpa %s548, 1
    %550 = vsyncpa [#allocation5], 1
    %s551 = scalar_lea.sflag [#allocation5], 1
    %552 = vsyncpa %s551, 1

</llo_original>
